<compile_context>
chip_gen: v6e
topology: v6e:2x2x1
jax: 0.10.0
libtpu: 0.0.40
codegen_flags: <defaults>
</compile_context>

<pallas_src>
import functools

import jax
import jax.numpy as jnp
from jax.experimental import pallas as pl
from jax.experimental.pallas import tpu as pltpu


def _round_up(x, m):
    return (x + m - 1) // m * m


def _vmem_capacity_bytes():
    try:
        return int(pltpu.get_tpu_info().vmem_capacity_bytes)
    except Exception:
        return 64 << 20  # conservative default (v7x per-TC)


# ----------------------------- kernels --------------------------------------


def _linear_resident_kernel(x_ref, wt_ref, o_ref):
    # x_ref: (TM, Dp) batch tile, wt_ref: (Dp, TN) resident/slab W^T,
    # o_ref: (TM, TN) lane-dense output tile.
    a = x_ref[...]
    w = wt_ref[...]
    if a.dtype != w.dtype:          # opt-in bf16 compute path (trace-time branch)
        a = a.astype(w.dtype)
    o_ref[...] = jnp.dot(a, w, preferred_element_type=jnp.float32).astype(o_ref.dtype)


def _linear_ktiled_kernel(x_ref, wt_ref, o_ref, acc_ref):
    # grid = (M, N, K), K innermost ("arbitrary"); acc_ref: f32 (TM, TN) scratch.
    @pl.when(pl.program_id(2) == 0)
    def _():
        acc_ref[...] = jnp.zeros_like(acc_ref)

    a = x_ref[...]
    w = wt_ref[...]
    if a.dtype != w.dtype:
        a = a.astype(w.dtype)
    acc_ref[...] += jnp.dot(a, w, preferred_element_type=jnp.float32)

    @pl.when(pl.program_id(2) == pl.num_programs(2) - 1)
    def _():
        o_ref[...] = acc_ref[...].astype(o_ref.dtype)


# ----------------------------- weight prep -----------------------------------


def prepare_weight(W, dtype=jnp.float32):
    """One-time weight prep (hoisted out of the per-call path).

    nn.Linear stores W as (out_dim, in_dim); the kernel wants a lane-dense
    W^T, zero-padded so both dims are multiples of 128.  Pass
    dtype=jnp.bfloat16 to opt into bf16 MXU compute (f32 accumulation is kept
    inside the kernel); default stays f32.
    """
    D = W.shape[0]
    assert W.shape == (D, D)
    Dp = _round_up(D, 128)
    Wt = W.T.astype(dtype)
    if Dp != D:
        Wt = jnp.pad(Wt, ((0, Dp - D), (0, Dp - D)))
    return Wt


# ----------------------------- tiling helpers --------------------------------


def _const_weight_spec(Dp):
    """Constant-index resident W^T block; single-buffered when supported.

    Returns (BlockSpec, buffer_multiplier) where the multiplier is used for
    VMEM accounting (1 if single-buffered, 2 if the runtime double-buffers).
    """
    index_map = lambda i, j: (0, 0)
    buffered = getattr(pl, "Buffered", None)
    if buffered is not None:
        try:
            return pl.BlockSpec((Dp, Dp), index_map, pipeline_mode=buffered(1)), 1
        except TypeError:
            pass
    return pl.BlockSpec((Dp, Dp), index_map), 2


def _choose_tm(B, tm_cap, sub=8):
    """Pick a batch tile, avoiding x/out HBM padding copies whenever possible.

    Returns (TM, Bp): if Bp == B no padding is needed.
    """
    tm_cap = max(sub, (int(tm_cap) // sub) * sub)
    if B <= tm_cap:
        return B, B                       # single M block == full batch (legal)
    floor = 128 if (B >= 1024 and tm_cap >= 128) else sub
    t = tm_cap
    while t >= floor:
        if B % t == 0:
            return t, B                   # exact multiple-of-8 divisor -> no pad
        t -= sub
    return tm_cap, _round_up(B, tm_cap)   # last resort: pad the batch


def _resident_tm_cap(Dp, x_item, out_item, w_vmem_bytes, vmem_cap):
    """Budget-driven M tile cap: grow TM while tiles + resident W^T fit VMEM."""
    budget = int(0.55 * vmem_cap) - w_vmem_bytes
    row_bytes = 2 * Dp * (x_item + out_item)     # double-buffered x + out per row
    cap = max(8, budget // max(row_bytes, 1))
    cap = (cap // 8) * 8
    return int(min(max(cap, 8), 2048))


def _ktiled_tiles(Dp, x_item, w_item, out_item, vmem_cap):
    """Budget-driven (TM_cap, TN, TK) for the large-D accumulator path."""
    budget = int(0.40 * vmem_cap)
    divs = [t for t in (1024, 768, 512, 384, 256, 128) if Dp % t == 0]
    best = None
    for tn in divs:
        for tk in divs:
            for tm in (512, 384, 256, 128):
                need = (2 * x_item * tm * tk          # double-buffered x tiles
                        + 2 * w_item * tk * tn        # double-buffered W^T tiles
                        + 2 * out_item * tm * tn      # double-buffered out tiles
                        + 4 * tm * tn)                # f32 accumulator
                if need > budget:
                    continue
                score = (tn * tk, tm, tn)             # big N/K tiles -> fewer K
                if best is None or score > best[0]:   # steps & less W restream
                    best = (score, tm, tn, tk)
    if best is None:
        return 128, 128, 128
    return best[1], best[2], best[3]


# ----------------------------- forward ---------------------------------------


@functools.partial(jax.jit, static_argnames=("dim",))
def generator_forward(x, wt_padded, dim):
    """y = x @ W.T  ==  nn.Linear(dim, dim, bias=False) forward."""
    orig_shape = x.shape
    if x.ndim != 2:
        x = x.reshape(-1, orig_shape[-1])
    B, D = x.shape
    assert D == dim

    Dp = wt_padded.shape[0]
    out_dtype = x.dtype
    x_item = jnp.dtype(x.dtype).itemsize
    out_item = jnp.dtype(out_dtype).itemsize
    w_item = jnp.dtype(wt_padded.dtype).itemsize
    weight_bytes = Dp * Dp * w_item

    vmem_cap = _vmem_capacity_bytes()
    resident = weight_bytes <= int(0.25 * vmem_cap)   # scales with chip VMEM

    if resident:
        # ---- resident-weight path: W^T lives in VMEM, batch tiles pipeline ----
        w_spec_const, w_bufs = _const_weight_spec(Dp)
        w_vmem = w_bufs * weight_bytes
        tm_cap = _resident_tm_cap(Dp, x_item, out_item, w_vmem, vmem_cap)
        TM, Bp = _choose_tm(B, tm_cap)
        grid_m = Bp // TM

        # Megacore (v7x): with a single M block, split output features into two
        # "parallel" N blocks so both TensorCores get independent work.
        if grid_m == 1 and Dp % 256 == 0:
            grid_n, TN = 2, Dp // 2
            w_spec = pl.BlockSpec((Dp, TN), lambda i, j: (0, j))
            w_vmem = 2 * Dp * TN * w_item           # two slabs, double-buffered
        else:
            grid_n, TN = 1, Dp
            w_spec = w_spec_const

        vmem_need = 2 * TM * Dp * x_item + 2 * TM * TN * out_item + w_vmem
        vmem_limit = int(min(0.9 * vmem_cap, max(32 << 20, vmem_need + (8 << 20))))
        w_reads = 1 if grid_n == 1 else grid_m
        cost = pl.CostEstimate(
            flops=2 * Bp * Dp * Dp,
            bytes_accessed=Bp * Dp * (x_item + out_item) + w_reads * weight_bytes,
            transcendentals=0,
        )

        pad_r, pad_c = Bp - B, Dp - D
        xp = x if (pad_r == 0 and pad_c == 0) else jnp.pad(x, ((0, pad_r), (0, pad_c)))

        out_p = pl.pallas_call(
            _linear_resident_kernel,
            out_shape=jax.ShapeDtypeStruct((Bp, Dp), out_dtype),
            grid=(grid_m, grid_n),
            in_specs=[
                pl.BlockSpec((TM, Dp), lambda i, j: (i, 0)),
                w_spec,
            ],
            out_specs=pl.BlockSpec((TM, TN), lambda i, j: (i, j)),
            compiler_params=pltpu.CompilerParams(
                dimension_semantics=("parallel", "parallel"),
                vmem_limit_bytes=vmem_limit,
            ),
            cost_estimate=cost,
        )(xp, wt_padded)
    else:
        # ---- K/N-tiled accumulator path for very large D ----
        tm_cap, TN, TK = _ktiled_tiles(Dp, x_item, w_item, out_item, vmem_cap)
        TM, Bp = _choose_tm(B, tm_cap)
        grid_m = Bp // TM

        vmem_need = (2 * x_item * TM * TK + 2 * w_item * TK * TN
                     + 2 * out_item * TM * TN + 4 * TM * TN)
        vmem_limit = int(min(0.9 * vmem_cap, max(32 << 20, vmem_need + (8 << 20))))
        cost = pl.CostEstimate(
            flops=2 * Bp * Dp * Dp,
            # W^T is re-streamed from HBM once per M tile with grid (M, N, K).
            bytes_accessed=Bp * Dp * (x_item + out_item) + grid_m * weight_bytes,
            transcendentals=0,
        )

        pad_r, pad_c = Bp - B, Dp - D
        xp = x if (pad_r == 0 and pad_c == 0) else jnp.pad(x, ((0, pad_r), (0, pad_c)))

        out_p = pl.pallas_call(
            _linear_ktiled_kernel,
            out_shape=jax.ShapeDtypeStruct((Bp, Dp), out_dtype),
            grid_spec=pltpu.PrefetchScalarGridSpec(
                num_scalar_prefetch=0,
                grid=(grid_m, Dp // TN, Dp // TK),
                in_specs=[
                    pl.BlockSpec((TM, TK), lambda i, j, k: (i, k)),
                    pl.BlockSpec((TK, TN), lambda i, j, k: (k, j)),
                ],
                out_specs=pl.BlockSpec((TM, TN), lambda i, j, k: (i, j)),
                scratch_shapes=[pltpu.VMEM((TM, TN), jnp.float32)],
            ),
            compiler_params=pltpu.CompilerParams(
                dimension_semantics=("parallel", "parallel", "arbitrary"),
                vmem_limit_bytes=vmem_limit,
            ),
            cost_estimate=cost,
        )(xp, wt_padded)

    out = out_p if (pad_r == 0 and pad_c == 0) else out_p[:B, :D]
    if len(orig_shape) != 2:
        out = out.reshape(orig_shape)
    return out


def make_orthogonal_weight(key, dim, dtype=jnp.float32):
    """Deterministic stand-in for scipy.stats.special_ortho_group.rvs(dim)."""
    A = jax.random.normal(key, (dim, dim), dtype=jnp.float32)
    Q, R = jnp.linalg.qr(A)
    signs = jnp.sign(jnp.diag(R))
    Q = Q * signs[None, :]
    det = jnp.linalg.det(Q)
    Q = Q.at[:, 0].multiply(jnp.sign(det))
    return Q.astype(dtype)


# TODO(synk): load/save/set/orthogonalityUpdate in the PyTorch module are
# host-side parameter management (file I/O / in-place weight updates), not part
# of the forward pass; they are intentionally not implemented as kernels.


if __name__ == "__main__":
    key = jax.random.PRNGKey(0)
    k_x, k_w, k_x2, k_w2 = jax.random.split(key, 4)

    # Case 1: small non-128-multiple dim (exercises padded resident path,
    # single-buffered constant weight block).
    batch, dim = 8, 32
    x = jax.random.normal(k_x, (batch, dim), dtype=jnp.float32)
    W = make_orthogonal_weight(k_w, dim)
    Wt_padded = prepare_weight(W)                 # one-time transpose + pad
    y = jax.block_until_ready(generator_forward(x, Wt_padded, dim=dim))
    y_ref = x @ W.T
    assert y.shape == (batch, dim)
    assert jnp.allclose(y, y_ref, atol=1e-5, rtol=1e-5)

    # Case 2: 128-multiple dim (no x pad / no output slice) with a single M
    # block -> exercises the 2-way N split (megacore) resident path.
    batch2, dim2 = 16, 256
    x2 = jax.random.normal(k_x2, (batch2, dim2), dtype=jnp.float32)
    W2 = make_orthogonal_weight(k_w2, dim2)
    Wt2 = prepare_weight(W2)
    y2 = jax.block_until_ready(generator_forward(x2, Wt2, dim=dim2))
    y2_ref = x2 @ W2.T
    assert y2.shape == (batch2, dim2)
    assert jnp.allclose(y2, y2_ref, atol=1e-4, rtol=1e-4)

    print("KERNEL_OK")
</pallas_src>

<mosaic_0001>
module attributes {stable_mosaic.version = 11 : i64} {
  func.func @_linear_resident_kernel(%arg0: i32, %arg1: i32, %arg2: memref<8x128xf32, #tpu.memory_space<vmem>>, %arg3: memref<128x128xf32, #tpu.memory_space<vmem>>, %arg4: memref<8x128xf32, #tpu.memory_space<vmem>>) attributes {dimension_semantics = [#tpu.dimension_semantics<parallel>, #tpu.dimension_semantics<parallel>], iteration_bounds = array<i64: 1, 1>, scalar_prefetch = 0 : i64, scratch_operands = 0 : i64, tpu.core_type = #tpu.core_type<tc>, window_params = [{transform_indices = @transform_0, window_bounds = array<i64: 8, 128>}, {pipeline_mode = #tpu.pipeline_mode<synchronous>, transform_indices = @transform_1, window_bounds = array<i64: 128, 128>}, {transform_indices = @transform_2, window_bounds = array<i64: 8, 128>}]} {
    %c0 = arith.constant 0 : index
    %c0_0 = arith.constant 0 : index
    %0 = vector.load %arg2[%c0, %c0_0] : memref<8x128xf32, #tpu.memory_space<vmem>>, vector<8x128xf32>
    %c0_1 = arith.constant 0 : index
    %c0_2 = arith.constant 0 : index
    %1 = vector.load %arg3[%c0_1, %c0_2] : memref<128x128xf32, #tpu.memory_space<vmem>>, vector<128x128xf32>
    %cst = arith.constant dense<0.000000e+00> : vector<8x128xf32>
    %2 = tpu.matmul %0, %1, %cst {dimension_numbers = #tpu.dot_dimension_numbers<[1], [0], [0], [1], [0, 0, 1, 1], [], []>} : vector<8x128xf32>, vector<128x128xf32>, vector<8x128xf32> -> vector<8x128xf32>
    %c0_3 = arith.constant 0 : index
    %c0_4 = arith.constant 0 : index
    %3 = vector.load %arg4[%c0_3, %c0_4] : memref<8x128xf32, #tpu.memory_space<vmem>>, vector<8x128xf32>
    tpu.vector_store %arg4[%c0_3, %c0_4], %2 {strides = array<i32>} : memref<8x128xf32, #tpu.memory_space<vmem>>, vector<8x128xf32>,
    return
  }
  func.func @transform_0(%arg0: i32, %arg1: i32) -> (i32, i32) {
    %c0_i32 = arith.constant 0 : i32
    %c0_i32_0 = arith.constant 0 : i32
    return %arg0, %c0_i32 : i32, i32
  }
  func.func @transform_1(%arg0: i32, %arg1: i32) -> (i32, i32) {
    %c0_i32 = arith.constant 0 : i32
    %c0_i32_0 = arith.constant 0 : i32
    %c0_i32_1 = arith.constant 0 : i32
    return %c0_i32, %c0_i32_0 : i32, i32
  }
  func.func @transform_2(%arg0: i32, %arg1: i32) -> (i32, i32) {
    %c0_i32 = arith.constant 0 : i32
    return %arg0, %arg1 : i32, i32
  }
}

</mosaic_0001>

<llo_original>
// kernel: generator_forward.1
$region0: #{generator_forward.1}
  #allocation0 [shape = 'u32[]', space=smem, size = 0x4, offset = 0x4, fixed_abs, tag = 'smem constant byte address 0x4 - core index']
  #allocation1 [shape = 'u32[144,128]{1,0:T(1,128)}', space=vmem, size = 0x12000, scoped, tag = 'internal scratch']
  %s0 = inlined_call_operand.vmem [shape: f32[8,128], index: 0, kind: input, shape index: {}]
  %s1 = inlined_call_operand.hbm [shape: f32[128,128], index: 1, kind: input, shape index: {}]
  %s2 = inlined_call_operand.hbm [shape: f32[8,128], index: 2, kind: output, shape index: {}]
  %s3 = sld [smem:[#allocation0]]
  $region22: #{generator_forward.1} parent=0
    _
  %s5 = ssub.s32 1, %s3
  %s6 = scalar_select 0, %s5, %s3
  $region1: #{generator_forward.1} parent=0
    #allocation2 [shape = 'u8[65536]{0}', space=vmem, size = 0x10000, scoped, tag = 'input window, operand 1, single buffered']
    #allocation3 [shape = 's32[1]{0}', space=sflag, size = 0x4, scoped, tag = 'scoped memory for generator_forward.1']
    #allocation4 [shape = 's32[1]{0}', space=sflag, size = 0x4, scoped, tag = 'scoped memory for generator_forward.1']
    #allocation5 [shape = 'u8[4096]{0}', space=vmem, size = 0x1000, scoped, tag = 'output window, operand 0, single buffered']
    %7 = vsyncpa [#allocation3], 0
    %8 = vsyncpa [#allocation4], 0
    // Predicated region
    $region2: #{generator_forward.1} parent=1 // pred_check
      _
    $region3: #{generator_forward.1} parent=1 // pred_check_branch
      %10 = sbr.rel (0) target = $region5
    $region4: #{generator_forward.1} parent=1 // pred_region
      _
    $region5: #{generator_forward.1} parent=1 // pred_fallthru
      _
    // Predicated region
    $region6: #{generator_forward.1} parent=1 // pred_check
      _
    $region7: #{generator_forward.1} parent=1 // pred_check_branch
      %12 = sbr.rel (0) target = $region9
    $region8: #{generator_forward.1} parent=1 // pred_region
      %s14 = ssub.s32 2048, 2048
      %15 = vsyncadd [#allocation3], %s14
      %s16 = sshll.u32 [#allocation2], 4
      %s17 = int_to_ptr.vmem [resolvable:$true] %s16
      %22 = dma.hbm_to_vmem [thread:$0]  %s1, 2048, %s17, [#allocation3], 128, 128, 8
    $region9: #{generator_forward.1} parent=1 // pred_fallthru
      _
    // Predicated region
    $region10: #{generator_forward.1} parent=1 // pred_check
      _
    $region11: #{generator_forward.1} parent=1 // pred_check_branch
      %24 = sbr.rel (0) target = $region13
    $region12: #{generator_forward.1} parent=1 // pred_region
      %25 = dma.done [#allocation3], 2048
    $region13: #{generator_forward.1} parent=1 // pred_fallthru
      _
    %v26 = vld [vmem:[%s0] sm:$0xff]
    %v27 = vld [vmem:[#allocation2] sm:$0xff]
    %v28 = vld [vmem:[#allocation2 + $0x8] sm:$0xff]
    %v29 = vld [vmem:[#allocation2 + $0x10] sm:$0xff]
    %v30 = vld [vmem:[#allocation2 + $0x18] sm:$0xff]
    %v31 = vld [vmem:[#allocation2 + $0x20] sm:$0xff]
    %v32 = vld [vmem:[#allocation2 + $0x28] sm:$0xff]
    %v33 = vld [vmem:[#allocation2 + $0x30] sm:$0xff]
    %v34 = vld [vmem:[#allocation2 + $0x38] sm:$0xff]
    %v35 = vld [vmem:[#allocation2 + $0x40] sm:$0xff]
    %v36 = vld [vmem:[#allocation2 + $0x48] sm:$0xff]
    %v37 = vld [vmem:[#allocation2 + $0x50] sm:$0xff]
    %v38 = vld [vmem:[#allocation2 + $0x58] sm:$0xff]
    %v39 = vld [vmem:[#allocation2 + $0x60] sm:$0xff]
    %v40 = vld [vmem:[#allocation2 + $0x68] sm:$0xff]
    %v41 = vld [vmem:[#allocation2 + $0x70] sm:$0xff]
    %v42 = vld [vmem:[#allocation2 + $0x78] sm:$0xff]
    %43 = vmatprep.subr.mxu0 0.0
    %44 = vmatpush1.msra.mxu0 %v42
    %45 = vmatprep.subr.mxu0 0.0
    %46 = vmatpush1.msra.mxu0 %v41
    %47 = vmatprep.subr.mxu0 0.0
    %48 = vmatpush1.msra.mxu0 %v40
    %49 = vmatprep.subr.mxu0 0.0
    %50 = vmatpush1.msra.mxu0 %v39
    %51 = vmatprep.subr.mxu0 0.0
    %52 = vmatpush1.msra.mxu0 %v38
    %53 = vmatprep.subr.mxu0 0.0
    %54 = vmatpush1.msra.mxu0 %v37
    %55 = vmatprep.subr.mxu0 0.0
    %56 = vmatpush1.msra.mxu0 %v36
    %57 = vmatprep.subr.mxu0 0.0
    %58 = vmatpush1.msra.mxu0 %v35
    %59 = vmatprep.subr.mxu0 0.0
    %60 = vmatpush1.msra.mxu0 %v34
    %61 = vmatprep.subr.mxu0 0.0
    %62 = vmatpush1.msra.mxu0 %v33
    %63 = vmatprep.subr.mxu0 0.0
    %64 = vmatpush1.msra.mxu0 %v32
    %65 = vmatprep.subr.mxu0 0.0
    %66 = vmatpush1.msra.mxu0 %v31
    %67 = vmatprep.subr.mxu0 0.0
    %68 = vmatpush1.msra.mxu0 %v30
    %69 = vmatprep.subr.mxu0 0.0
    %70 = vmatpush1.msra.mxu0 %v29
    %71 = vmatprep.subr.mxu0 0.0
    %72 = vmatpush1.msra.mxu0 %v28
    %73 = vmatprep.subr.mxu0 0.0
    %74 = vmatpush1.msra.mxu0 %v27
    %75 = vmatprep.subr.mxu0 0.0
    %76 = vmatpush2.msra.mxu0 0.0
    %77 = vmatprep.subr.mxu0 0.0
    %78 = vmatpush2.msra.mxu0 0.0
    %79 = vmatprep.subr.mxu0 0.0
    %80 = vmatpush2.msra.mxu0 0.0
    %81 = vmatprep.subr.mxu0 0.0
    %82 = vmatpush2.msra.mxu0 0.0
    %83 = vmatprep.subr.mxu0 0.0
    %84 = vmatpush2.msra.mxu0 0.0
    %85 = vmatprep.subr.mxu0 0.0
    %86 = vmatpush2.msra.mxu0 0.0
    %87 = vmatprep.subr.mxu0 0.0
    %88 = vmatpush2.msra.mxu0 0.0
    %89 = vmatprep.subr.mxu0 0.0
    %90 = vmatpush2.msra.mxu0 0.0
    %91 = vmatprep.subr.mxu0 0.0
    %92 = vmatpush2.msra.mxu0 0.0
    %93 = vmatprep.subr.mxu0 0.0
    %94 = vmatpush2.msra.mxu0 0.0
    %95 = vmatprep.subr.mxu0 0.0
    %96 = vmatpush2.msra.mxu0 0.0
    %97 = vmatprep.subr.mxu0 0.0
    %98 = vmatpush2.msra.mxu0 0.0
    %99 = vmatprep.subr.mxu0 0.0
    %100 = vmatpush2.msra.mxu0 0.0
    %101 = vmatprep.subr.mxu0 0.0
    %102 = vmatpush2.msra.mxu0 0.0
    %103 = vmatprep.subr.mxu0 0.0
    %104 = vmatpush2.msra.mxu0 0.0
    %105 = vmatprep.subr.mxu0 0.0
    %106 = vmatpush2.msra.mxu0 0.0
    %107 = vmatprep.mubr.f32.mxu0 0.0
    %108 = vmatmul.mubr.f32.gmra.mxu0 %v26
    %v109 = vpop.f32.mrf.mxu0
    %v110 = vadd.f32 0.0, %v109
    %v111 = vpop.f32.mrf.mxu0
    %112 = vdwg.mxu0
    %113 = vst [vmem:[#allocation5] sm:$0xff] %v110
    // Predicated region
    $region14: #{generator_forward.1} parent=1 // pred_check
      _
    $region15: #{generator_forward.1} parent=1 // pred_check_branch
      %115 = sbr.rel (0) target = $region17
    $region16: #{generator_forward.1} parent=1 // pred_region
      %s117 = ssub.s32 128, 128
      %118 = vsyncadd [#allocation4], %s117
      %s120 = sshll.u32 [#allocation5], 4
      %s121 = int_to_ptr.vmem [resolvable:$true] %s120
      %123 = dma.vmem_to_hbm [thread:$0]  %s121, 128, %s2, [#allocation4]
    $region17: #{generator_forward.1} parent=1 // pred_fallthru
      _
    // Predicated region
    $region18: #{generator_forward.1} parent=1 // pred_check
      _
    $region19: #{generator_forward.1} parent=1 // pred_check_branch
      %125 = sbr.rel (0) target = $region21
    $region20: #{generator_forward.1} parent=1 // pred_region
      %126 = dma.done [#allocation4], 128
    $region21: #{generator_forward.1} parent=1 // pred_fallthru
      _
    %127 = vsyncpa [#allocation3], 1
    %128 = vsyncpa [#allocation4], 1

</llo_original>
